<compile_context>
chip_gen: v5e
topology: v5e:2x2
jax: 0.10.0
libtpu: 0.0.40
codegen_flags: <defaults>
</compile_context>

<pallas_src>
import jax
import jax.numpy as jnp
from jax import lax
from jax.experimental import pallas as pl
from jax.experimental.pallas import tpu as pltpu

EPS = 1e-5


# ---------------- fused kernel: conv1x1+BN+ReLU -> grouped3x3+BN+ReLU ----------------
def make_fused_kernel(H, W, C):
    """Fused kernel operating on (C, L) with L = images_per_step * H * W lanes."""

    def kernel(x_ref, w1_ref, t1_ref, w2_ref, t2_ref, mask_ref, o_ref):
        # x_ref : (Cin, L) f32        w1_ref: (C, Cin) bf16    t1_ref: (C, 1) f32
        # w2_ref: (C, 9*C) bf16 block-diagonal grouped weight, BN scale folded in
        # t2_ref: (C, 1) f32          mask_ref: (9, L) f32     o_ref: (C, L) f32
        x = x_ref[...].astype(jnp.bfloat16)

        # ---- stage 1: 1x1 conv (BN scale folded into w1) + shift + ReLU ----
        y1 = jnp.dot(w1_ref[...], x, preferred_element_type=jnp.float32)
        y1 = jnp.maximum(y1 + t1_ref[...], 0.0)                  # (C, L) f32, lane-dense

        # ---- stage 2: grouped 3x3 conv as ONE block-diagonal dot ----
        # A (dh, dw) spatial shift in the flattened layout is a lane roll by dh*W+dw
        # plus a precomputed border mask.  The mask zeroes anything that spills across
        # an image border (including spill between the batch images folded into lanes),
        # so the circular wrap of the roll never leaks wrong data.
        L = y1.shape[-1]
        pieces = []
        tap = 0
        for kh in range(3):
            for kw in range(3):
                dh, dw = kh - 1, kw - 1
                off = dh * W + dw
                if off == 0:
                    pieces.append(y1)
                else:
                    shifted = pltpu.roll(y1, shift=(-off) % L, axis=1)
                    pieces.append(shifted * mask_ref[pl.ds(tap, 1), :])
                tap += 1
        # sublane-axis concat -> (9*C, L) "im2col"; cast to bf16 AFTER the concat
        x9 = jnp.concatenate(pieces, axis=0).astype(jnp.bfloat16)

        y2 = jnp.dot(w2_ref[...], x9, preferred_element_type=jnp.float32)
        o_ref[...] = jnp.maximum(y2 + t2_ref[...], 0.0)

    return kernel


# ---------------- one-time weight preparation (hoisted off the per-call path) ----------------
def prepare_params(params, groups):
    (w1, b1, g1, be1, m1, v1, w2, b2, g2, be2, m2, v2) = params
    Cout, Cin = w1.shape[0], w1.shape[1]
    Cg = Cout // groups

    # fold eval-mode BN into conv weights (scale) + per-channel shift
    s1 = g1 / jnp.sqrt(v1 + EPS)
    w1s = (w1[:, :, 0, 0] * s1[:, None]).astype(jnp.bfloat16)       # (Cout, Cin)
    t1 = ((b1 - m1) * s1 + be1)[:, None].astype(jnp.float32)        # (Cout, 1)

    s2 = g2 / jnp.sqrt(v2 + EPS)
    # expand grouped weights to a dense block-diagonal (Cout, 9*Cout) matrix
    w2_full = jnp.zeros((3, 3, Cout, Cout), jnp.float32)            # [kh, kw, out, in_global]
    for g in range(groups):
        blk = jnp.transpose(w2[g * Cg:(g + 1) * Cg], (2, 3, 0, 1))  # (3,3,Cg_out,Cg_in)
        w2_full = w2_full.at[:, :, g * Cg:(g + 1) * Cg, g * Cg:(g + 1) * Cg].set(blk)
    w2_bd = (jnp.transpose(w2_full, (2, 0, 1, 3)).reshape(Cout, 9 * Cout)
             * s2[:, None]).astype(jnp.bfloat16)                    # (Cout, 9*Cout)
    t2 = ((b2 - m2) * s2 + be2)[:, None].astype(jnp.float32)        # (Cout, 1)
    return w1s, t1, w2_bd, t2


def _build_border_masks(H, W, images_per_step):
    """(9, images_per_step*H*W) f32 validity masks, one row per 3x3 tap."""
    HW = H * W
    col = jnp.arange(HW)
    h = col // W
    w = col - h * W
    rows = []
    for kh in range(3):
        for kw in range(3):
            dh, dw = kh - 1, kw - 1
            hh, ww = h + dh, w + dw
            valid = ((hh >= 0) & (hh < H) & (ww >= 0) & (ww < W)).astype(jnp.float32)
            rows.append(valid)
    m = jnp.stack(rows, axis=0)                                     # (9, HW)
    return jnp.tile(m, (1, images_per_step))                        # (9, imgs*HW)


def _default_num_steps(N):
    # v7x has 2 TensorCores/chip -> give megacore a 2-way "parallel" grid when the
    # batch splits evenly; v5e/v6e (1 TC) collapse to a single grid step.
    try:
        kind = jax.devices()[0].device_kind.lower()
    except Exception:
        kind = ""
    n_tc = 2 if "v7" in kind else 1
    return n_tc if (N % n_tc == 0 and n_tc <= N) else 1


# ---------------- module wrapper ----------------
def group_conv_module(x_nchw, prepared, groups, num_steps=None):
    """Pallas implementation of GroupConv.forward (eval mode). Input/output: NCHW f32."""
    w1s, t1, w2_bd, t2 = prepared
    N, Cin, H, W = x_nchw.shape
    Cout = w1s.shape[0]
    HW = H * W

    if num_steps is None:
        num_steps = _default_num_steps(N)
    assert N % num_steps == 0
    n_chunk = N // num_steps
    L = n_chunk * HW                                                # lanes per grid step

    masks = _build_border_masks(H, W, n_chunk)                      # (9, L), grid-invariant

    # layout: channels on sublanes, batch folded into the lane axis
    x2d = jnp.transpose(x_nchw.reshape(N, Cin, HW), (1, 0, 2)).reshape(Cin, N * HW)

    flops = 2 * Cout * Cin * N * HW + 2 * Cout * (9 * Cout) * N * HW
    bytes_accessed = (x2d.size * 4 + Cout * N * HW * 4 + masks.size * 4
                      + w1s.size * 2 + w2_bd.size * 2 + (t1.size + t2.size) * 4)

    out2d = pl.pallas_call(
        make_fused_kernel(H, W, Cout),
        out_shape=jax.ShapeDtypeStruct((Cout, N * HW), jnp.float32),
        grid=(num_steps,),
        in_specs=[
            pl.BlockSpec((Cin, L), lambda s: (0, s)),
            pl.BlockSpec((Cout, Cin), lambda s: (0, 0)),
            pl.BlockSpec((Cout, 1), lambda s: (0, 0)),
            pl.BlockSpec((Cout, 9 * Cout), lambda s: (0, 0)),
            pl.BlockSpec((Cout, 1), lambda s: (0, 0)),
            pl.BlockSpec((9, L), lambda s: (0, 0)),
        ],
        out_specs=pl.BlockSpec((Cout, L), lambda s: (0, s)),
        compiler_params=pltpu.CompilerParams(
            dimension_semantics=("parallel",),
        ),
        cost_estimate=pl.CostEstimate(
            flops=flops, transcendentals=0, bytes_accessed=bytes_accessed),
    )(x2d, w1s, t1, w2_bd, t2, masks)

    # free-ish layout change back to NCHW
    return jnp.transpose(out2d.reshape(Cout, N, HW), (1, 0, 2)).reshape(N, Cout, H, W)


# ---------------- pure-JAX reference (for correctness check) ----------------
def reference(x_nchw, params, groups):
    (w1, b1, g1, be1, m1, v1, w2, b2, g2, be2, m2, v2) = params
    dn = ('NCHW', 'OIHW', 'NCHW')
    y = lax.conv_general_dilated(x_nchw, w1, (1, 1), 'VALID', dimension_numbers=dn)
    y = y + b1[None, :, None, None]
    y = (y - m1[None, :, None, None]) / jnp.sqrt(v1 + EPS)[None, :, None, None] \
        * g1[None, :, None, None] + be1[None, :, None, None]
    y = jnp.maximum(y, 0.0)
    y = lax.conv_general_dilated(y, w2, (1, 1), ((1, 1), (1, 1)),
                                 dimension_numbers=dn, feature_group_count=groups)
    y = y + b2[None, :, None, None]
    y = (y - m2[None, :, None, None]) / jnp.sqrt(v2 + EPS)[None, :, None, None] \
        * g2[None, :, None, None] + be2[None, :, None, None]
    return jnp.maximum(y, 0.0)


if __name__ == "__main__":
    # Small shapes consistent with the module
    N, Cin, H, W = 2, 4, 16, 16
    Cout, groups = 8, 2

    key = jax.random.PRNGKey(0)
    ks = jax.random.split(key, 12)

    x = jax.random.normal(ks[0], (N, Cin, H, W), jnp.float32)

    # Deterministic parameter init (synthetic, not a checkpoint)
    w1 = jax.random.normal(ks[1], (Cout, Cin, 1, 1), jnp.float32) * 0.3
    b1 = jax.random.normal(ks[2], (Cout,), jnp.float32) * 0.1
    g1 = 1.0 + 0.1 * jax.random.normal(ks[3], (Cout,), jnp.float32)
    be1 = 0.1 * jax.random.normal(ks[4], (Cout,), jnp.float32)
    m1 = 0.1 * jax.random.normal(ks[5], (Cout,), jnp.float32)
    v1 = 1.0 + 0.1 * jnp.abs(jax.random.normal(ks[6], (Cout,), jnp.float32))

    w2 = jax.random.normal(ks[7], (Cout, Cout // groups, 3, 3), jnp.float32) * 0.2
    b2 = jax.random.normal(ks[8], (Cout,), jnp.float32) * 0.1
    g2 = 1.0 + 0.1 * jax.random.normal(ks[9], (Cout,), jnp.float32)
    be2 = 0.1 * jax.random.normal(ks[10], (Cout,), jnp.float32)
    m2 = 0.1 * jax.random.normal(ks[11], (Cout,), jnp.float32)
    v2 = 1.0 + 0.1 * jnp.abs(jax.random.normal(jax.random.PRNGKey(42), (Cout,), jnp.float32))

    params = (w1, b1, g1, be1, m1, v1, w2, b2, g2, be2, m2, v2)

    # weight prep happens once, off the per-call path
    prepared = prepare_params(params, groups)

    out = group_conv_module(x, prepared, groups)
    out = jax.block_until_ready(out)

    ref = jax.block_until_ready(reference(x, params, groups))
    assert out.shape == (N, Cout, H, W), out.shape
    # bf16 MXU inputs (f32 accumulate): tolerance relaxed from 1e-4 accordingly
    assert jnp.allclose(out, ref, atol=5e-2, rtol=5e-2), \
        f"max err {jnp.max(jnp.abs(out - ref))}"

    print("KERNEL_OK")
</pallas_src>

<mosaic_0001>
module attributes {stable_mosaic.version = 11 : i64} {
  func.func @kernel(%arg0: i32, %arg1: memref<4x512xf32, #tpu.memory_space<vmem>>, %arg2: memref<8x4xbf16, #tpu.memory_space<vmem>>, %arg3: memref<8x1xf32, #tpu.memory_space<vmem>>, %arg4: memref<8x72xbf16, #tpu.memory_space<vmem>>, %arg5: memref<8x1xf32, #tpu.memory_space<vmem>>, %arg6: memref<9x512xf32, #tpu.memory_space<vmem>>, %arg7: memref<8x512xf32, #tpu.memory_space<vmem>>) attributes {dimension_semantics = [#tpu.dimension_semantics<parallel>], iteration_bounds = array<i64: 1>, scalar_prefetch = 0 : i64, scratch_operands = 0 : i64, tpu.core_type = #tpu.core_type<tc>, window_params = [{transform_indices = @transform_0, window_bounds = array<i64: 4, 512>}, {pipeline_mode = #tpu.pipeline_mode<synchronous>, transform_indices = @transform_1, window_bounds = array<i64: 8, 4>}, {pipeline_mode = #tpu.pipeline_mode<synchronous>, transform_indices = @transform_2, window_bounds = array<i64: 8, 1>}, {pipeline_mode = #tpu.pipeline_mode<synchronous>, transform_indices = @transform_3, window_bounds = array<i64: 8, 72>}, {pipeline_mode = #tpu.pipeline_mode<synchronous>, transform_indices = @transform_4, window_bounds = array<i64: 8, 1>}, {pipeline_mode = #tpu.pipeline_mode<synchronous>, transform_indices = @transform_5, window_bounds = array<i64: 9, 512>}, {transform_indices = @transform_6, window_bounds = array<i64: 8, 512>}]} {
    %c0 = arith.constant 0 : index
    %c0_0 = arith.constant 0 : index
    %0 = vector.load %arg1[%c0, %c0_0] : memref<4x512xf32, #tpu.memory_space<vmem>>, vector<4x512xf32>
    %1 = arith.truncf %0 : vector<4x512xf32> to vector<4x512xbf16>
    %c0_1 = arith.constant 0 : index
    %c0_2 = arith.constant 0 : index
    %2 = vector.load %arg2[%c0_1, %c0_2] : memref<8x4xbf16, #tpu.memory_space<vmem>>, vector<8x4xbf16>
    %cst = arith.constant dense<0.000000e+00> : vector<8x512xf32>
    %3 = tpu.matmul %2, %1, %cst {dimension_numbers = #tpu.dot_dimension_numbers<[1], [0], [0], [1], [0, 0, 1, 1], [], []>} : vector<8x4xbf16>, vector<4x512xbf16>, vector<8x512xf32> -> vector<8x512xf32>
    %c0_3 = arith.constant 0 : index
    %c0_4 = arith.constant 0 : index
    %4 = vector.load %arg3[%c0_3, %c0_4] : memref<8x1xf32, #tpu.memory_space<vmem>>, vector<8x1xf32>
    %5 = vector.broadcast %4 : vector<8x1xf32> to vector<8x512xf32>
    %6 = arith.addf %3, %5 : vector<8x512xf32>
    %cst_5 = arith.constant 0.000000e+00 : f32
    %7 = vector.broadcast %cst_5 : f32 to vector<8x512xf32>
    %8 = arith.maximumf %6, %7 : vector<8x512xf32>
    %c17_i32 = arith.constant 17 : i32
    %9 = tpu.dynamic_rotate %8 by %c17_i32 dim 1 : vector<8x512xf32>, i32 -> vector<8x512xf32>
    %c0_6 = arith.constant 0 : index
    %c0_7 = arith.constant 0 : index
    %10 = vector.load %arg6[%c0_6, %c0_7] : memref<9x512xf32, #tpu.memory_space<vmem>>, vector<1x512xf32>
    %11 = vector.broadcast %10 : vector<1x512xf32> to vector<8x512xf32>
    %12 = arith.mulf %9, %11 : vector<8x512xf32>
    %c16_i32 = arith.constant 16 : i32
    %13 = tpu.dynamic_rotate %8 by %c16_i32 dim 1 : vector<8x512xf32>, i32 -> vector<8x512xf32>
    %c1 = arith.constant 1 : index
    %c0_8 = arith.constant 0 : index
    %14 = vector.load %arg6[%c1, %c0_8] : memref<9x512xf32, #tpu.memory_space<vmem>>, vector<1x512xf32>
    %15 = vector.broadcast %14 : vector<1x512xf32> to vector<8x512xf32>
    %16 = arith.mulf %13, %15 : vector<8x512xf32>
    %c15_i32 = arith.constant 15 : i32
    %17 = tpu.dynamic_rotate %8 by %c15_i32 dim 1 : vector<8x512xf32>, i32 -> vector<8x512xf32>
    %c2 = arith.constant 2 : index
    %c0_9 = arith.constant 0 : index
    %18 = vector.load %arg6[%c2, %c0_9] : memref<9x512xf32, #tpu.memory_space<vmem>>, vector<1x512xf32>
    %19 = vector.broadcast %18 : vector<1x512xf32> to vector<8x512xf32>
    %20 = arith.mulf %17, %19 : vector<8x512xf32>
    %c1_i32 = arith.constant 1 : i32
    %21 = tpu.dynamic_rotate %8 by %c1_i32 dim 1 : vector<8x512xf32>, i32 -> vector<8x512xf32>
    %c3 = arith.constant 3 : index
    %c0_10 = arith.constant 0 : index
    %22 = vector.load %arg6[%c3, %c0_10] : memref<9x512xf32, #tpu.memory_space<vmem>>, vector<1x512xf32>
    %23 = vector.broadcast %22 : vector<1x512xf32> to vector<8x512xf32>
    %24 = arith.mulf %21, %23 : vector<8x512xf32>
    %c511_i32 = arith.constant 511 : i32
    %25 = tpu.dynamic_rotate %8 by %c511_i32 dim 1 : vector<8x512xf32>, i32 -> vector<8x512xf32>
    %c5 = arith.constant 5 : index
    %c0_11 = arith.constant 0 : index
    %26 = vector.load %arg6[%c5, %c0_11] : memref<9x512xf32, #tpu.memory_space<vmem>>, vector<1x512xf32>
    %27 = vector.broadcast %26 : vector<1x512xf32> to vector<8x512xf32>
    %28 = arith.mulf %25, %27 : vector<8x512xf32>
    %c497_i32 = arith.constant 497 : i32
    %29 = tpu.dynamic_rotate %8 by %c497_i32 dim 1 : vector<8x512xf32>, i32 -> vector<8x512xf32>
    %c6 = arith.constant 6 : index
    %c0_12 = arith.constant 0 : index
    %30 = vector.load %arg6[%c6, %c0_12] : memref<9x512xf32, #tpu.memory_space<vmem>>, vector<1x512xf32>
    %31 = vector.broadcast %30 : vector<1x512xf32> to vector<8x512xf32>
    %32 = arith.mulf %29, %31 : vector<8x512xf32>
    %c496_i32 = arith.constant 496 : i32
    %33 = tpu.dynamic_rotate %8 by %c496_i32 dim 1 : vector<8x512xf32>, i32 -> vector<8x512xf32>
    %c7 = arith.constant 7 : index
    %c0_13 = arith.constant 0 : index
    %34 = vector.load %arg6[%c7, %c0_13] : memref<9x512xf32, #tpu.memory_space<vmem>>, vector<1x512xf32>
    %35 = vector.broadcast %34 : vector<1x512xf32> to vector<8x512xf32>
    %36 = arith.mulf %33, %35 : vector<8x512xf32>
    %c495_i32 = arith.constant 495 : i32
    %37 = tpu.dynamic_rotate %8 by %c495_i32 dim 1 : vector<8x512xf32>, i32 -> vector<8x512xf32>
    %c8 = arith.constant 8 : index
    %c0_14 = arith.constant 0 : index
    %38 = vector.load %arg6[%c8, %c0_14] : memref<9x512xf32, #tpu.memory_space<vmem>>, vector<1x512xf32>
    %39 = vector.broadcast %38 : vector<1x512xf32> to vector<8x512xf32>
    %40 = arith.mulf %37, %39 : vector<8x512xf32>
    %41 = tpu.concatenate %12, %16, %20, %24, %8, %28, %32, %36, %40 in 0 : vector<8x512xf32>, vector<8x512xf32>, vector<8x512xf32>, vector<8x512xf32>, vector<8x512xf32>, vector<8x512xf32>, vector<8x512xf32>, vector<8x512xf32>, vector<8x512xf32> -> vector<72x512xf32>
    %42 = arith.truncf %41 : vector<72x512xf32> to vector<72x512xbf16>
    %c0_15 = arith.constant 0 : index
    %c0_16 = arith.constant 0 : index
    %43 = vector.load %arg4[%c0_15, %c0_16] : memref<8x72xbf16, #tpu.memory_space<vmem>>, vector<8x72xbf16>
    %cst_17 = arith.constant dense<0.000000e+00> : vector<8x512xf32>
    %44 = tpu.matmul %43, %42, %cst_17 {dimension_numbers = #tpu.dot_dimension_numbers<[1], [0], [0], [1], [0, 0, 1, 1], [], []>} : vector<8x72xbf16>, vector<72x512xbf16>, vector<8x512xf32> -> vector<8x512xf32>
    %c0_18 = arith.constant 0 : index
    %c0_19 = arith.constant 0 : index
    %45 = vector.load %arg5[%c0_18, %c0_19] : memref<8x1xf32, #tpu.memory_space<vmem>>, vector<8x1xf32>
    %46 = vector.broadcast %45 : vector<8x1xf32> to vector<8x512xf32>
    %47 = arith.addf %44, %46 : vector<8x512xf32>
    %cst_20 = arith.constant 0.000000e+00 : f32
    %48 = vector.broadcast %cst_20 : f32 to vector<8x512xf32>
    %49 = arith.maximumf %47, %48 : vector<8x512xf32>
    %c0_21 = arith.constant 0 : index
    %c0_22 = arith.constant 0 : index
    %50 = vector.load %arg7[%c0_21, %c0_22] : memref<8x512xf32, #tpu.memory_space<vmem>>, vector<8x512xf32>
    tpu.vector_store %arg7[%c0_21, %c0_22], %49 {strides = array<i32>} : memref<8x512xf32, #tpu.memory_space<vmem>>, vector<8x512xf32>,
    return
  }
  func.func @transform_0(%arg0: i32) -> (i32, i32) {
    %c0_i32 = arith.constant 0 : i32
    %c0_i32_0 = arith.constant 0 : i32
    return %c0_i32, %arg0 : i32, i32
  }
  func.func @transform_1(%arg0: i32) -> (i32, i32) {
    %c0_i32 = arith.constant 0 : i32
    %c0_i32_0 = arith.constant 0 : i32
    %c0_i32_1 = arith.constant 0 : i32
    return %c0_i32, %c0_i32_0 : i32, i32
  }
  func.func @transform_2(%arg0: i32) -> (i32, i32) {
    %c0_i32 = arith.constant 0 : i32
    %c0_i32_0 = arith.constant 0 : i32
    %c0_i32_1 = arith.constant 0 : i32
    return %c0_i32, %c0_i32_0 : i32, i32
  }
  func.func @transform_3(%arg0: i32) -> (i32, i32) {
    %c0_i32 = arith.constant 0 : i32
    %c0_i32_0 = arith.constant 0 : i32
    %c0_i32_1 = arith.constant 0 : i32
    return %c0_i32, %c0_i32_0 : i32, i32
  }
  func.func @transform_4(%arg0: i32) -> (i32, i32) {
    %c0_i32 = arith.constant 0 : i32
    %c0_i32_0 = arith.constant 0 : i32
    %c0_i32_1 = arith.constant 0 : i32
    return %c0_i32, %c0_i32_0 : i32, i32
  }
  func.func @transform_5(%arg0: i32) -> (i32, i32) {
    %c0_i32 = arith.constant 0 : i32
    %c0_i32_0 = arith.constant 0 : i32
    %c0_i32_1 = arith.constant 0 : i32
    return %c0_i32, %c0_i32_0 : i32, i32
  }
  func.func @transform_6(%arg0: i32) -> (i32, i32) {
    %c0_i32 = arith.constant 0 : i32
    %c0_i32_0 = arith.constant 0 : i32
    return %c0_i32, %arg0 : i32, i32
  }
}

</mosaic_0001>

<llo_original>
// kernel: tpu_custom_call.1
$region0: #{tpu_custom_call.1}
  #allocation0 [shape = 'u32[]', space=smem, size = 0x4, offset = 0x4, fixed_abs, tag = 'smem constant byte address 0x4 - core index']
  #allocation1 [shape = 'u32[72,128]{1,0:T(1,128)}', space=vmem, size = 0x9000, scoped, tag = 'internal scratch']
  %s0 = inlined_call_operand.vmem [shape: f32[4,512], index: 0, kind: input, shape index: {}]
  %s1 = inlined_call_operand.vmem [shape: bf16[8,4], index: 1, kind: input, shape index: {}]
  %s2 = inlined_call_operand.vmem [shape: f32[8,1], index: 2, kind: input, shape index: {}]
  %s3 = inlined_call_operand.vmem [shape: bf16[8,72], index: 3, kind: input, shape index: {}]
  %s4 = inlined_call_operand.vmem [shape: f32[8,1], index: 4, kind: input, shape index: {}]
  %s5 = inlined_call_operand.hbm [shape: f32[9,512], index: 5, kind: input, shape index: {}]
  %s6 = inlined_call_operand.hbm [shape: f32[8,512], index: 6, kind: output, shape index: {}]
  %s7 = sld [smem:[#allocation0]]
  $region38: #{tpu_custom_call.1} parent=0
    _
  %s9 = ssub.s32 1, %s7
  %s10 = scalar_select 0, %s9, %s7
  $region1: #{tpu_custom_call.1} parent=0
    #allocation2 [shape = 'u8[32768]{0}', space=vmem, size = 0x8000, scoped, tag = 'input window, operand 5, single buffered']
    #allocation3 [shape = 's32[1]{0}', space=sflag, size = 0x4, scoped, tag = 'scoped memory for tpu_custom_call.1']
    #allocation4 [shape = 's32[1]{0}', space=sflag, size = 0x4, scoped, tag = 'scoped memory for tpu_custom_call.1']
    #allocation5 [shape = 'u8[16384]{0}', space=vmem, size = 0x4000, scoped, tag = 'output window, operand 0, single buffered']
    %11 = vsyncpa [#allocation3], 0
    %12 = vsyncpa [#allocation4], 0
    // Predicated region
    $region2: #{tpu_custom_call.1} parent=1 // pred_check
      _
    $region3: #{tpu_custom_call.1} parent=1 // pred_check_branch
      %14 = sbr.rel (0) target = $region5
    $region4: #{tpu_custom_call.1} parent=1 // pred_region
      _
    $region5: #{tpu_custom_call.1} parent=1 // pred_fallthru
      _
    // Predicated region
    $region6: #{tpu_custom_call.1} parent=1 // pred_check
      _
    $region7: #{tpu_custom_call.1} parent=1 // pred_check_branch
      %16 = sbr.rel (0) target = $region9
    $region8: #{tpu_custom_call.1} parent=1 // pred_region
      _
    $region9: #{tpu_custom_call.1} parent=1 // pred_fallthru
      _
    // Predicated region
    $region10: #{tpu_custom_call.1} parent=1 // pred_check
      _
    $region11: #{tpu_custom_call.1} parent=1 // pred_check_branch
      %18 = sbr.rel (0) target = $region13
    $region12: #{tpu_custom_call.1} parent=1 // pred_region
      _
    $region13: #{tpu_custom_call.1} parent=1 // pred_fallthru
      _
    // Predicated region
    $region14: #{tpu_custom_call.1} parent=1 // pred_check
      _
    $region15: #{tpu_custom_call.1} parent=1 // pred_check_branch
      %20 = sbr.rel (0) target = $region17
    $region16: #{tpu_custom_call.1} parent=1 // pred_region
      _
    $region17: #{tpu_custom_call.1} parent=1 // pred_fallthru
      _
    // Predicated region
    $region18: #{tpu_custom_call.1} parent=1 // pred_check
      _
    $region19: #{tpu_custom_call.1} parent=1 // pred_check_branch
      %22 = sbr.rel (0) target = $region21
    $region20: #{tpu_custom_call.1} parent=1 // pred_region
      _
    $region21: #{tpu_custom_call.1} parent=1 // pred_fallthru
      _
    // Predicated region
    $region22: #{tpu_custom_call.1} parent=1 // pred_check
      _
    $region23: #{tpu_custom_call.1} parent=1 // pred_check_branch
      %24 = sbr.rel (0) target = $region25
    $region24: #{tpu_custom_call.1} parent=1 // pred_region
      %26 = vsyncadd [#allocation3], 0
      %s27 = sshll.u32 %s5, 4
      %s28 = int_to_ptr.hbm [resolvable:$true] %s27
      %s29 = sshll.u32 [#allocation2], 4
      %s30 = int_to_ptr.vmem [resolvable:$true] %s29
      %35 = dma.hbm_to_vmem [thread:$0]  %s28, 1024, %s30, [#allocation3], 512, 512, 32
    $region25: #{tpu_custom_call.1} parent=1 // pred_fallthru
      _
    // Predicated region
    $region26: #{tpu_custom_call.1} parent=1 // pred_check
      _
    $region27: #{tpu_custom_call.1} parent=1 // pred_check_branch
      %37 = sbr.rel (0) target = $region29
    $region28: #{tpu_custom_call.1} parent=1 // pred_region
      %39 = dma.done [#allocation3], 1024
    $region29: #{tpu_custom_call.1} parent=1 // pred_fallthru
      _
    %v41 = vld [vmem:[%s0] sm:$0xff]
    %v42 = vld [vmem:[%s0 + $0x8] sm:$0xff]
    %45 = vst [vmem:[#allocation1] ss:$2 sm:$0xff] %v41
    %s46 = scalar_lea.vmem [#allocation1], 16
    %47 = vst [vmem:[%s46] ss:$2 sm:$0xff] %v42
    %v48 = vld.sshfl [vmem:[#allocation1] sm:$0xff pattern:$0x75316420]
    %v49 = vld.sshfl [vmem:[#allocation1 + $0x8] sm:$0xff pattern:$0x75316420]
    %v50 = vld.sshfl [vmem:[#allocation1 + $0x10] sm:$0xff pattern:$0x75316420]
    %v51 = vld.sshfl [vmem:[#allocation1 + $0x18] sm:$0xff pattern:$0x75316420]
    %v56 = vpack.c.bf16 %v48, %v48
    %v57 = vpack.c.bf16 %v49, %v49
    %v58 = vpack.c.bf16 %v50, %v50
    %v59 = vpack.c.bf16 %v51, %v51
    %v60 = vld [vmem:[%s1] sm:$0xf]
    %v61 = vld [vmem:[%s2] sm:$0xff]
    %63 = vset.pattern.permute.xlu0 0
    %64 = vperm.xlu0 %63, %v61
    %v65 = vpop.permute.xlu0 %64
    %vm67 = vcmask 31744
    %v69 = vsel %vm67, %v60, 0
    %vm71 = vcmask 1041408
    %v73 = vsel %vm71, %v56, 0
    %v76 = vsel %vm71, %v57, 0
    %v79 = vsel %vm71, %v58, 0
    %v82 = vsel %vm71, %v59, 0
    %84 = vmatpush.bf16.msra.mxu0 0
    %85 = vmatpush.bf16.msra.mxu0 0
    %86 = vmatpush.bf16.msra.mxu0 0
    %87 = vmatpush.bf16.msra.mxu0 0
    %88 = vmatpush.bf16.msra.mxu0 0
    %89 = vmatpush.bf16.msra.mxu0 0
    %90 = vmatpush.bf16.msra.mxu0 0
    %91 = vmatpush.bf16.msra.mxu0 %v73
    %92 = vmatmul.bf16.gmra.mxu0 %v69
    %v93 = vpop.f32.mrf.mxu0
    %v94 = vadd.f32 %v65, %v93
    %v95 = vpop.f32.mrf.mxu0
    %96 = vdwg.mxu0
    %97 = vmatpush.bf16.msra.mxu0 0
    %98 = vmatpush.bf16.msra.mxu0 0
    %99 = vmatpush.bf16.msra.mxu0 0
    %100 = vmatpush.bf16.msra.mxu0 0
    %101 = vmatpush.bf16.msra.mxu0 0
    %102 = vmatpush.bf16.msra.mxu0 0
    %103 = vmatpush.bf16.msra.mxu0 0
    %104 = vmatpush.bf16.msra.mxu0 %v76
    %105 = vmatmul.bf16.gmra.mxu0 %v69
    %v106 = vpop.f32.mrf.mxu0
    %v107 = vadd.f32 %v65, %v106
    %v108 = vpop.f32.mrf.mxu0
    %109 = vdwg.mxu0
    %110 = vmatpush.bf16.msra.mxu0 0
    %111 = vmatpush.bf16.msra.mxu0 0
    %112 = vmatpush.bf16.msra.mxu0 0
    %113 = vmatpush.bf16.msra.mxu0 0
    %114 = vmatpush.bf16.msra.mxu0 0
    %115 = vmatpush.bf16.msra.mxu0 0
    %116 = vmatpush.bf16.msra.mxu0 0
    %117 = vmatpush.bf16.msra.mxu0 %v79
    %118 = vmatmul.bf16.gmra.mxu0 %v69
    %v119 = vpop.f32.mrf.mxu0
    %v120 = vadd.f32 %v65, %v119
    %v121 = vpop.f32.mrf.mxu0
    %122 = vdwg.mxu0
    %123 = vmatpush.bf16.msra.mxu0 0
    %124 = vmatpush.bf16.msra.mxu0 0
    %125 = vmatpush.bf16.msra.mxu0 0
    %126 = vmatpush.bf16.msra.mxu0 0
    %127 = vmatpush.bf16.msra.mxu0 0
    %128 = vmatpush.bf16.msra.mxu0 0
    %129 = vmatpush.bf16.msra.mxu0 0
    %130 = vmatpush.bf16.msra.mxu0 %v82
    %131 = vmatmul.bf16.gmra.mxu0 %v69
    %v132 = vpop.f32.mrf.mxu0
    %v133 = vadd.f32 %v65, %v132
    %v134 = vpop.f32.mrf.mxu0
    %135 = vdwg.mxu0
    %v136 = vmax.f32 %v94, 0.0
    %v137 = vmax.f32 %v107, 0.0
    %v138 = vmax.f32 %v120, 0.0
    %v139 = vmax.f32 %v133, 0.0
    %140 = vrot.lane.b32.xlu0 %v136, 17
    %v141 = vpop.permute.xlu0 %140
    %142 = vrot.lane.b32.xlu0 %v137, 17
    %v143 = vpop.permute.xlu0 %142
    %144 = vrot.lane.b32.xlu0 %v138, 17
    %v145 = vpop.permute.xlu0 %144
    %146 = vrot.lane.b32.xlu0 %v139, 17
    %v147 = vpop.permute.xlu0 %146
    %v148 = vlaneseq
    %v149 = vand.u32 %v148, 127
    %vm150 = vcmp.lt.s32.totalorder %v149, 17
    %v151 = vsel %vm150, %v145, %v147
    %v152 = vsel %vm150, %v143, %v145
    %v153 = vsel %vm150, %v141, %v143
    %v154 = vsel %vm150, %v147, %v141
    %v155 = vld [vmem:[#allocation2] ss:$8 sm:$0xf]
    %v157 = vperm.slane %v155, 0
    %v158 = vperm.slane %v155, 1
    %v159 = vperm.slane %v155, 2
    %v160 = vperm.slane %v155, 3
    %v165 = vmul.f32 %v154, %v157
    %v166 = vmul.f32 %v153, %v158
    %v167 = vmul.f32 %v152, %v159
    %v168 = vmul.f32 %v151, %v160
    %169 = vrot.lane.b32.xlu0 %v136, 16
    %v170 = vpop.permute.xlu0 %169
    %171 = vrot.lane.b32.xlu0 %v137, 16
    %v172 = vpop.permute.xlu0 %171
    %173 = vrot.lane.b32.xlu0 %v138, 16
    %v174 = vpop.permute.xlu0 %173
    %175 = vrot.lane.b32.xlu0 %v139, 16
    %v176 = vpop.permute.xlu0 %175
    %vm177 = vcmp.lt.s32.totalorder %v149, 16
    %v178 = vsel %vm177, %v174, %v176
    %v179 = vsel %vm177, %v172, %v174
    %v180 = vsel %vm177, %v170, %v172
    %v181 = vsel %vm177, %v176, %v170
    %s182 = scalar_lea.vmem [#allocation2], 1
    %v183 = vld [vmem:[%s182] ss:$8 sm:$0xf]
    %v185 = vperm.slane %v183, 0
    %v186 = vperm.slane %v183, 1
    %v187 = vperm.slane %v183, 2
    %v188 = vperm.slane %v183, 3
    %v193 = vmul.f32 %v181, %v185
    %v194 = vmul.f32 %v180, %v186
    %v195 = vmul.f32 %v179, %v187
    %v196 = vmul.f32 %v178, %v188
    %197 = vrot.lane.b32.xlu0 %v136, 15
    %v198 = vpop.permute.xlu0 %197
    %199 = vrot.lane.b32.xlu0 %v137, 15
    %v200 = vpop.permute.xlu0 %199
    %201 = vrot.lane.b32.xlu0 %v138, 15
    %v202 = vpop.permute.xlu0 %201
    %203 = vrot.lane.b32.xlu0 %v139, 15
    %v204 = vpop.permute.xlu0 %203
    %vm205 = vcmp.lt.s32.totalorder %v149, 15
    %v206 = vsel %vm205, %v202, %v204
    %v207 = vsel %vm205, %v200, %v202
    %v208 = vsel %vm205, %v198, %v200
    %v209 = vsel %vm205, %v204, %v198
    %s210 = scalar_lea.vmem [#allocation2], 2
    %v211 = vld [vmem:[%s210] ss:$8 sm:$0xf]
    %v213 = vperm.slane %v211, 0
    %v214 = vperm.slane %v211, 1
    %v215 = vperm.slane %v211, 2
    %v216 = vperm.slane %v211, 3
    %v221 = vmul.f32 %v209, %v213
    %v222 = vmul.f32 %v208, %v214
    %v223 = vmul.f32 %v207, %v215
    %v224 = vmul.f32 %v206, %v216
    %225 = vrot.lane.b32.xlu0 %v136, 1
    %v226 = vpop.permute.xlu0 %225
    %227 = vrot.lane.b32.xlu0 %v137, 1
    %v228 = vpop.permute.xlu0 %227
    %229 = vrot.lane.b32.xlu0 %v138, 1
    %v230 = vpop.permute.xlu0 %229
    %231 = vrot.lane.b32.xlu0 %v139, 1
    %v232 = vpop.permute.xlu0 %231
    %vm233 = vcmp.lt.s32.totalorder %v149, 1
    %v234 = vsel %vm233, %v230, %v232
    %v235 = vsel %vm233, %v228, %v230
    %v236 = vsel %vm233, %v226, %v228
    %v237 = vsel %vm233, %v232, %v226
    %s238 = scalar_lea.vmem [#allocation2], 3
    %v239 = vld [vmem:[%s238] ss:$8 sm:$0xf]
    %v241 = vperm.slane %v239, 0
    %v242 = vperm.slane %v239, 1
    %v243 = vperm.slane %v239, 2
    %v244 = vperm.slane %v239, 3
    %v249 = vmul.f32 %v237, %v241
    %v250 = vmul.f32 %v236, %v242
    %v251 = vmul.f32 %v235, %v243
    %v252 = vmul.f32 %v234, %v244
    %253 = vrot.lane.b32.xlu0 %v136, 127
    %v254 = vpop.permute.xlu0 %253
    %255 = vrot.lane.b32.xlu0 %v137, 127
    %v256 = vpop.permute.xlu0 %255
    %257 = vrot.lane.b32.xlu0 %v138, 127
    %v258 = vpop.permute.xlu0 %257
    %259 = vrot.lane.b32.xlu0 %v139, 127
    %v260 = vpop.permute.xlu0 %259
    %vm261 = vcmp.lt.s32.totalorder %v149, 127
    %v262 = vsel %vm261, %v258, %v260
    %v263 = vsel %vm261, %v256, %v258
    %v264 = vsel %vm261, %v254, %v256
    %v265 = vsel %vm261, %v260, %v254
    %s266 = scalar_lea.vmem [#allocation2], 5
    %v267 = vld [vmem:[%s266] ss:$8 sm:$0xf]
    %v269 = vperm.slane %v267, 0
    %v270 = vperm.slane %v267, 1
    %v271 = vperm.slane %v267, 2
    %v272 = vperm.slane %v267, 3
    %v277 = vmul.f32 %v264, %v269
    %v278 = vmul.f32 %v263, %v270
    %v279 = vmul.f32 %v262, %v271
    %v280 = vmul.f32 %v265, %v272
    %281 = vrot.lane.b32.xlu0 %v136, 113
    %v282 = vpop.permute.xlu0 %281
    %283 = vrot.lane.b32.xlu0 %v137, 113
    %v284 = vpop.permute.xlu0 %283
    %285 = vrot.lane.b32.xlu0 %v138, 113
    %v286 = vpop.permute.xlu0 %285
    %287 = vrot.lane.b32.xlu0 %v139, 113
    %v288 = vpop.permute.xlu0 %287
    %vm289 = vcmp.lt.s32.totalorder %v149, 113
    %v290 = vsel %vm289, %v286, %v288
    %v291 = vsel %vm289, %v284, %v286
    %v292 = vsel %vm289, %v282, %v284
    %v293 = vsel %vm289, %v288, %v282
    %s294 = scalar_lea.vmem [#allocation2], 6
    %v295 = vld [vmem:[%s294] ss:$8 sm:$0xf]
    %v297 = vperm.slane %v295, 0
    %v298 = vperm.slane %v295, 1
    %v299 = vperm.slane %v295, 2
    %v300 = vperm.slane %v295, 3
    %v305 = vmul.f32 %v292, %v297
    %v306 = vmul.f32 %v291, %v298
    %v307 = vmul.f32 %v290, %v299
    %v308 = vmul.f32 %v293, %v300
    %309 = vrot.lane.b32.xlu0 %v136, 112
    %v310 = vpop.permute.xlu0 %309
    %311 = vrot.lane.b32.xlu0 %v137, 112
    %v312 = vpop.permute.xlu0 %311
    %313 = vrot.lane.b32.xlu0 %v138, 112
    %v314 = vpop.permute.xlu0 %313
    %315 = vrot.lane.b32.xlu0 %v139, 112
    %v316 = vpop.permute.xlu0 %315
    %vm317 = vcmp.lt.s32.totalorder %v149, 112
    %v318 = vsel %vm317, %v314, %v316
    %v319 = vsel %vm317, %v312, %v314
    %v320 = vsel %vm317, %v310, %v312
    %v321 = vsel %vm317, %v316, %v310
    %s322 = scalar_lea.vmem [#allocation2], 7
    %v323 = vld [vmem:[%s322] ss:$8 sm:$0xf]
    %v325 = vperm.slane %v323, 0
    %v326 = vperm.slane %v323, 1
    %v327 = vperm.slane %v323, 2
    %v328 = vperm.slane %v323, 3
    %v333 = vmul.f32 %v320, %v325
    %v334 = vmul.f32 %v319, %v326
    %v335 = vmul.f32 %v318, %v327
    %v336 = vmul.f32 %v321, %v328
    %337 = vrot.lane.b32.xlu0 %v136, 111
    %v338 = vpop.permute.xlu0 %337
    %339 = vrot.lane.b32.xlu0 %v137, 111
    %v340 = vpop.permute.xlu0 %339
    %341 = vrot.lane.b32.xlu0 %v138, 111
    %v342 = vpop.permute.xlu0 %341
    %343 = vrot.lane.b32.xlu0 %v139, 111
    %v344 = vpop.permute.xlu0 %343
    %vm345 = vcmp.lt.s32.totalorder %v149, 111
    %v346 = vsel %vm345, %v342, %v344
    %v347 = vsel %vm345, %v340, %v342
    %v348 = vsel %vm345, %v338, %v340
    %v349 = vsel %vm345, %v344, %v338
    %s350 = scalar_lea.vmem [#allocation2], 32
    %v351 = vld [vmem:[%s350] ss:$8 sm:$0xf]
    %v353 = vperm.slane %v351, 0
    %v354 = vperm.slane %v351, 1
    %v355 = vperm.slane %v351, 2
    %v356 = vperm.slane %v351, 3
    %v361 = vmul.f32 %v348, %v353
    %v362 = vmul.f32 %v347, %v354
    %v363 = vmul.f32 %v346, %v355
    %v364 = vmul.f32 %v349, %v356
    %v365 = vpack.c.bf16 %v193, %v165
    %v366 = vpack.c.bf16 %v194, %v166
    %v367 = vpack.c.bf16 %v195, %v167
    %v368 = vpack.c.bf16 %v196, %v168
    %v369 = vpack.c.bf16 %v249, %v221
    %v370 = vpack.c.bf16 %v250, %v222
    %v371 = vpack.c.bf16 %v251, %v223
    %v372 = vpack.c.bf16 %v252, %v224
    %v373 = vpack.c.bf16 %v277, %v136
    %v374 = vpack.c.bf16 %v278, %v137
    %v375 = vpack.c.bf16 %v279, %v138
    %v376 = vpack.c.bf16 %v280, %v139
    %v377 = vpack.c.bf16 %v333, %v305
    %v378 = vpack.c.bf16 %v334, %v306
    %v379 = vpack.c.bf16 %v335, %v307
    %v380 = vpack.c.bf16 %v336, %v308
    %v381 = vpack.c.bf16 %v361, %v361
    %v382 = vpack.c.bf16 %v362, %v362
    %v383 = vpack.c.bf16 %v363, %v363
    %v384 = vpack.c.bf16 %v364, %v364
    %v385 = vld [vmem:[%s3] sm:$0xf]
    %v386 = vld [vmem:[%s4] sm:$0xff]
    %388 = vset.pattern.permute.xlu0 0
    %389 = vperm.xlu0 %388, %v386
    %v390 = vpop.permute.xlu0 %389
    %vm392 = vcmask 588800
    %v394 = vsel %vm392, %v385, 0
    %vm396 = vcmask 1043456
    %v398 = vsel %vm396, %v381, 0
    %v401 = vsel %vm396, %v382, 0
    %v404 = vsel %vm396, %v383, 0
    %v407 = vsel %vm396, %v384, 0
    %409 = vmatpush.bf16.msra.mxu0 0
    %410 = vmatpush.bf16.msra.mxu0 0
    %411 = vmatpush.bf16.msra.mxu0 0
    %412 = vmatpush.bf16.msra.mxu0 %v398
    %413 = vmatpush.bf16.msra.mxu0 %v377
    %414 = vmatpush.bf16.msra.mxu0 %v373
    %415 = vmatpush.bf16.msra.mxu0 %v369
    %416 = vmatpush.bf16.msra.mxu0 %v365
    %417 = vmatmul.bf16.gmra.mxu0 %v394
    %v418 = vpop.f32.mrf.mxu0
    %v419 = vadd.f32 %v390, %v418
    %v420 = vpop.f32.mrf.mxu0
    %421 = vdwg.mxu0
    %422 = vmatpush.bf16.msra.mxu0 0
    %423 = vmatpush.bf16.msra.mxu0 0
    %424 = vmatpush.bf16.msra.mxu0 0
    %425 = vmatpush.bf16.msra.mxu0 %v401
    %426 = vmatpush.bf16.msra.mxu0 %v378
    %427 = vmatpush.bf16.msra.mxu0 %v374
    %428 = vmatpush.bf16.msra.mxu0 %v370
    %429 = vmatpush.bf16.msra.mxu0 %v366
    %430 = vmatmul.bf16.gmra.mxu0 %v394
    %v431 = vpop.f32.mrf.mxu0
    %v432 = vadd.f32 %v390, %v431
    %v433 = vpop.f32.mrf.mxu0
    %434 = vdwg.mxu0
    %435 = vmatpush.bf16.msra.mxu0 0
    %436 = vmatpush.bf16.msra.mxu0 0
    %437 = vmatpush.bf16.msra.mxu0 0
    %438 = vmatpush.bf16.msra.mxu0 %v404
    %439 = vmatpush.bf16.msra.mxu0 %v379
    %440 = vmatpush.bf16.msra.mxu0 %v375
    %441 = vmatpush.bf16.msra.mxu0 %v371
    %442 = vmatpush.bf16.msra.mxu0 %v367
    %443 = vmatmul.bf16.gmra.mxu0 %v394
    %v444 = vpop.f32.mrf.mxu0
    %v445 = vadd.f32 %v390, %v444
    %v446 = vpop.f32.mrf.mxu0
    %447 = vdwg.mxu0
    %448 = vmatpush.bf16.msra.mxu0 0
    %449 = vmatpush.bf16.msra.mxu0 0
    %450 = vmatpush.bf16.msra.mxu0 0
    %451 = vmatpush.bf16.msra.mxu0 %v407
    %452 = vmatpush.bf16.msra.mxu0 %v380
    %453 = vmatpush.bf16.msra.mxu0 %v376
    %454 = vmatpush.bf16.msra.mxu0 %v372
    %455 = vmatpush.bf16.msra.mxu0 %v368
    %456 = vmatmul.bf16.gmra.mxu0 %v394
    %v457 = vpop.f32.mrf.mxu0
    %v458 = vadd.f32 %v390, %v457
    %v459 = vpop.f32.mrf.mxu0
    %460 = vdwg.mxu0
    %v461 = vmax.f32 %v419, 0.0
    %v462 = vmax.f32 %v432, 0.0
    %v463 = vmax.f32 %v445, 0.0
    %v464 = vmax.f32 %v458, 0.0
    %465 = vst [vmem:[#allocation5] sm:$0xff] %v461
    %466 = vst [vmem:[#allocation5 + $0x8] sm:$0xff] %v462
    %467 = vst [vmem:[#allocation5 + $0x10] sm:$0xff] %v463
    %468 = vst [vmem:[#allocation5 + $0x18] sm:$0xff] %v464
    // Predicated region
    $region30: #{tpu_custom_call.1} parent=1 // pred_check
      _
    $region31: #{tpu_custom_call.1} parent=1 // pred_check_branch
      %470 = sbr.rel (0) target = $region33
    $region32: #{tpu_custom_call.1} parent=1 // pred_region
      %472 = vsyncadd [#allocation4], 0
      %s474 = sshll.u32 [#allocation5], 4
      %s475 = int_to_ptr.vmem [resolvable:$true] %s474
      %s476 = sshll.u32 %s6, 4
      %s477 = int_to_ptr.hbm [resolvable:$true] %s476
      %479 = dma.vmem_to_hbm [thread:$0]  %s475, 512, %s477, [#allocation4]
    $region33: #{tpu_custom_call.1} parent=1 // pred_fallthru
      _
    // Predicated region
    $region34: #{tpu_custom_call.1} parent=1 // pred_check
      _
    $region35: #{tpu_custom_call.1} parent=1 // pred_check_branch
      %481 = sbr.rel (0) target = $region37
    $region36: #{tpu_custom_call.1} parent=1 // pred_region
      %483 = dma.done [#allocation4], 512
    $region37: #{tpu_custom_call.1} parent=1 // pred_fallthru
      _
    %484 = vsyncpa [#allocation3], 1
    %485 = vsyncpa [#allocation4], 1

</llo_original>
